<compile_context>
chip_gen: v5e
topology: v5e:2x2
jax: 0.10.0
libtpu: 0.0.40
codegen_flags: <defaults>
</compile_context>

<pallas_src>
import functools

import jax
import jax.numpy as jnp
from jax.experimental import pallas as pl
from jax.experimental.pallas import tpu as pltpu


# ---------------------------------------------------------------------------
# Kernel
# ---------------------------------------------------------------------------
def feed_nabla_mu_kernel(s_ref, a_ref,
                         w1s_ref, w1a_ref, b1_ref,
                         w2_ref, b2_ref,
                         w3_ref, b3_ref,
                         out_ref):
    """One batch tile: 3 matmuls + bias + ReLU, all on-chip.

    MXU operands use the stored weight dtype (f32 or bf16); the VPU epilogue
    (alpha outer-product, bias adds, ReLU) and accumulation are f32.
    """
    w_dtype = w1s_ref.dtype
    s = s_ref[...].astype(w_dtype)              # (TB, S)   MXU input
    a = a_ref[...].astype(jnp.float32)          # (TB, 1)   VPU path, f32

    # Layer 1: Linear(S+1 -> Hp) + ReLU  (cat split: s@W1[:S] + alpha*W1[S])
    h = jnp.dot(s, w1s_ref[...], preferred_element_type=jnp.float32)
    h = h + a * w1a_ref[...] + b1_ref[...]      # broadcasts (1,Hp) rows
    h = jnp.maximum(h, 0.0)

    # Layer 2: Linear(Hp -> Hp) + ReLU
    h = jnp.dot(h.astype(w_dtype), w2_ref[...],
                preferred_element_type=jnp.float32) + b2_ref[...]
    h = jnp.maximum(h, 0.0)

    # Layer 3: Linear(Hp -> OUTp), no activation
    y = jnp.dot(h.astype(w_dtype), w3_ref[...],
                preferred_element_type=jnp.float32) + b3_ref[...]

    out_ref[...] = y.astype(out_ref.dtype)


# ---------------------------------------------------------------------------
# Host-side helpers
# ---------------------------------------------------------------------------
def _round_up(x, m):
    return ((x + m - 1) // m) * m


def _pad2d(x, rows, cols):
    return jnp.pad(x, ((0, rows - x.shape[0]), (0, cols - x.shape[1])))


def _choose_tb(batch, s_dim, h_pad, out_pad, budget_bytes=24 * 1024 * 1024):
    """Pick a batch tile: fits a 32 MiB scoped-VMEM budget with headroom,
    multiple of 8 (f32 sublane), capped at 512 to avoid vreg pressure."""
    # Resident weights (count as f32 — upper bound even for bf16 storage).
    w_bytes = 4 * (s_dim * h_pad + 3 * h_pad + h_pad * h_pad
                   + h_pad * out_pad + out_pad)
    avail = max(budget_bytes - w_bytes, 1 << 20)
    # Per-batch-row bytes: double-buffered streamed tiles (s, a, out) plus
    # live f32 temporaries (h, y) held once.
    per_row = 2 * 4 * (s_dim + 1 + out_pad) + 4 * (h_pad + out_pad)
    tb = max(8, min(512, (avail // per_row) // 8 * 8))
    return int(min(tb, _round_up(batch, 8)))


def init_params(key, state_dim, hidden_dim, feature_dim, hidden_depth=2):
    """PyTorch-Linear-style init (U(-1/sqrt(fan_in), +)), weights stored
    transposed as [in, out]. Logical (unpadded) params for the reference."""
    assert hidden_depth == 2  # TODO(synk): generalize to arbitrary hidden_depth
    out_dim = feature_dim * state_dim
    ks = jax.random.split(key, 6)

    def lin(kw, kb, fan_in, fan_out):
        bound = 1.0 / jnp.sqrt(jnp.float32(fan_in))
        w = jax.random.uniform(kw, (fan_in, fan_out), jnp.float32, -bound, bound)
        b = jax.random.uniform(kb, (1, fan_out), jnp.float32, -bound, bound)
        return w, b

    w1, b1 = lin(ks[0], ks[1], state_dim + 1, hidden_dim)
    w2, b2 = lin(ks[2], ks[3], hidden_dim, hidden_dim)
    w3, b3 = lin(ks[4], ks[5], hidden_dim, out_dim)
    return {"w1": w1, "b1": b1, "w2": w2, "b2": b2, "w3": w3, "b3": b3}


def pack_params(params, state_dim, mxu_dtype=jnp.float32):
    """Pre-split W1, zero-pad hidden/output dims to multiples of 128 (lane
    dense), and cast MXU operands to `mxu_dtype`. Done once, not per call."""
    S = state_dim
    H = params["w1"].shape[1]
    OUT = params["w3"].shape[1]
    Hp = _round_up(H, 128)
    OUTp = _round_up(OUT, 128)

    return {
        "w1s": _pad2d(params["w1"][:S, :], S, Hp).astype(mxu_dtype),
        "w1a": _pad2d(params["w1"][S:, :], 1, Hp),            # f32 (VPU path)
        "b1":  _pad2d(params["b1"], 1, Hp),
        "w2":  _pad2d(params["w2"], Hp, Hp).astype(mxu_dtype),
        "b2":  _pad2d(params["b2"], 1, Hp),
        "w3":  _pad2d(params["w3"], Hp, OUTp).astype(mxu_dtype),
        "b3":  _pad2d(params["b3"], 1, OUTp),
        "out_dim": OUT, "Hp": Hp, "OUTp": OUTp, "S": S,
    }


@functools.partial(jax.jit, static_argnames=("tb",))
def _feed_nabla_mu_padded(s, a, w1s, w1a, b1, w2, b2, w3, b3, *, tb):
    """Gridded pallas_call on already batch-padded inputs."""
    Bp, S = s.shape
    Hp = w2.shape[0]
    OUTp = w3.shape[1]
    grid = (Bp // tb,)

    batch_tile = lambda i: (i, 0)   # streamed per grid step
    resident = lambda i: (0, 0)     # weights stay in VMEM across all steps

    return pl.pallas_call(
        feed_nabla_mu_kernel,
        out_shape=jax.ShapeDtypeStruct((Bp, OUTp), s.dtype),
        grid_spec=pltpu.PrefetchScalarGridSpec(
            num_scalar_prefetch=0,
            grid=grid,
            in_specs=[
                pl.BlockSpec((tb, S), batch_tile),
                pl.BlockSpec((tb, 1), batch_tile),
                pl.BlockSpec((S, Hp), resident),
                pl.BlockSpec((1, Hp), resident),
                pl.BlockSpec((1, Hp), resident),
                pl.BlockSpec((Hp, Hp), resident),
                pl.BlockSpec((1, Hp), resident),
                pl.BlockSpec((Hp, OUTp), resident),
                pl.BlockSpec((1, OUTp), resident),
            ],
            out_specs=pl.BlockSpec((tb, OUTp), batch_tile),
        ),
        compiler_params=pltpu.CompilerParams(
            dimension_semantics=("parallel",),       # megacore on v7x
            vmem_limit_bytes=32 * 1024 * 1024,        # explicit; v7x headroom
        ),
    )(s, a, w1s, w1a, b1, w2, b2, w3, b3)


def feed_nabla_mu(perturbed_next_state, alpha, packed, tb=None):
    """forward(perturbed_next_state, alpha) -> (B, feature_dim * state_dim)."""
    B, S = perturbed_next_state.shape
    assert S == packed["S"]

    if tb is None:
        tb = _choose_tb(B, S, packed["Hp"], packed["OUTp"])
    Bp = _round_up(max(B, tb), tb)

    s, a = perturbed_next_state, alpha
    if Bp != B:
        s = jnp.pad(s, ((0, Bp - B), (0, 0)))
        a = jnp.pad(a, ((0, Bp - B), (0, 0)))

    out = _feed_nabla_mu_padded(
        s, a, packed["w1s"], packed["w1a"], packed["b1"],
        packed["w2"], packed["b2"], packed["w3"], packed["b3"], tb=tb)
    return out[:B, :packed["out_dim"]]


def reference(perturbed_next_state, alpha, params):
    x = jnp.concatenate([perturbed_next_state, alpha], axis=-1)
    h = jnp.maximum(x @ params["w1"] + params["b1"], 0.0)
    h = jnp.maximum(h @ params["w2"] + params["b2"], 0.0)
    return h @ params["w3"] + params["b3"]


# ---------------------------------------------------------------------------
# Self-test
# ---------------------------------------------------------------------------
if __name__ == "__main__":
    batch, state_dim, hidden_dim, feature_dim, hidden_depth = 2, 8, 32, 4, 2

    key = jax.random.PRNGKey(0)
    k_params, k_s, k_a = jax.random.split(key, 3)

    params = init_params(k_params, state_dim, hidden_dim, feature_dim,
                         hidden_depth)
    perturbed_next_state = jax.random.normal(k_s, (batch, state_dim),
                                             jnp.float32)
    alpha = jax.random.uniform(k_a, (batch, 1), jnp.float32)

    ref = reference(perturbed_next_state, alpha, params)

    # f32 MXU path: exact (padding + cat-split are algebraically lossless).
    packed_f32 = pack_params(params, state_dim, mxu_dtype=jnp.float32)
    out = feed_nabla_mu(perturbed_next_state, alpha, packed_f32)
    out = jax.block_until_ready(out)
    assert out.shape == (batch, feature_dim * state_dim), out.shape
    assert jnp.allclose(out, ref, atol=1e-5, rtol=1e-5), "f32 mismatch vs ref"

    # bf16-weights MXU path (production config for v6e/v7x): loose tolerance.
    packed_bf16 = pack_params(params, state_dim, mxu_dtype=jnp.bfloat16)
    out_bf16 = feed_nabla_mu(perturbed_next_state, alpha, packed_bf16)
    out_bf16 = jax.block_until_ready(out_bf16)
    assert jnp.allclose(out_bf16, ref, atol=5e-2, rtol=5e-2), \
        "bf16 mismatch vs ref"

    print("KERNEL_OK")
</pallas_src>

<mosaic_0001>
module attributes {stable_mosaic.version = 11 : i64} {
  func.func @feed_nabla_mu_kernel(%arg0: i32, %arg1: memref<8x8xf32, #tpu.memory_space<vmem>>, %arg2: memref<8x1xf32, #tpu.memory_space<vmem>>, %arg3: memref<8x128xf32, #tpu.memory_space<vmem>>, %arg4: memref<1x128xf32, #tpu.memory_space<vmem>>, %arg5: memref<1x128xf32, #tpu.memory_space<vmem>>, %arg6: memref<128x128xf32, #tpu.memory_space<vmem>>, %arg7: memref<1x128xf32, #tpu.memory_space<vmem>>, %arg8: memref<128x128xf32, #tpu.memory_space<vmem>>, %arg9: memref<1x128xf32, #tpu.memory_space<vmem>>, %arg10: memref<8x128xf32, #tpu.memory_space<vmem>>) attributes {dimension_semantics = [#tpu.dimension_semantics<parallel>], iteration_bounds = array<i64: 1>, scalar_prefetch = 0 : i64, scratch_operands = 0 : i64, tpu.core_type = #tpu.core_type<tc>, window_params = [{transform_indices = @transform_0, window_bounds = array<i64: 8, 8>}, {transform_indices = @transform_1, window_bounds = array<i64: 8, 1>}, {pipeline_mode = #tpu.pipeline_mode<synchronous>, transform_indices = @transform_2, window_bounds = array<i64: 8, 128>}, {pipeline_mode = #tpu.pipeline_mode<synchronous>, transform_indices = @transform_3, window_bounds = array<i64: 1, 128>}, {pipeline_mode = #tpu.pipeline_mode<synchronous>, transform_indices = @transform_4, window_bounds = array<i64: 1, 128>}, {pipeline_mode = #tpu.pipeline_mode<synchronous>, transform_indices = @transform_5, window_bounds = array<i64: 128, 128>}, {pipeline_mode = #tpu.pipeline_mode<synchronous>, transform_indices = @transform_6, window_bounds = array<i64: 1, 128>}, {pipeline_mode = #tpu.pipeline_mode<synchronous>, transform_indices = @transform_7, window_bounds = array<i64: 128, 128>}, {pipeline_mode = #tpu.pipeline_mode<synchronous>, transform_indices = @transform_8, window_bounds = array<i64: 1, 128>}, {transform_indices = @transform_9, window_bounds = array<i64: 8, 128>}]} {
    %c0 = arith.constant 0 : index
    %c0_0 = arith.constant 0 : index
    %0 = vector.load %arg1[%c0, %c0_0] : memref<8x8xf32, #tpu.memory_space<vmem>>, vector<8x8xf32>
    %c0_1 = arith.constant 0 : index
    %c0_2 = arith.constant 0 : index
    %1 = vector.load %arg2[%c0_1, %c0_2] : memref<8x1xf32, #tpu.memory_space<vmem>>, vector<8x1xf32>
    %c0_3 = arith.constant 0 : index
    %c0_4 = arith.constant 0 : index
    %2 = vector.load %arg3[%c0_3, %c0_4] : memref<8x128xf32, #tpu.memory_space<vmem>>, vector<8x128xf32>
    %cst = arith.constant dense<0.000000e+00> : vector<8x128xf32>
    %3 = tpu.matmul %0, %2, %cst {dimension_numbers = #tpu.dot_dimension_numbers<[1], [0], [0], [1], [0, 0, 1, 1], [], []>} : vector<8x8xf32>, vector<8x128xf32>, vector<8x128xf32> -> vector<8x128xf32>
    %c0_5 = arith.constant 0 : index
    %c0_6 = arith.constant 0 : index
    %4 = vector.load %arg4[%c0_5, %c0_6] : memref<1x128xf32, #tpu.memory_space<vmem>>, vector<1x128xf32>
    %5 = vector.broadcast %1 : vector<8x1xf32> to vector<8x128xf32>
    %6 = vector.broadcast %4 : vector<1x128xf32> to vector<8x128xf32>
    %7 = arith.mulf %5, %6 : vector<8x128xf32>
    %8 = arith.addf %3, %7 : vector<8x128xf32>
    %c0_7 = arith.constant 0 : index
    %c0_8 = arith.constant 0 : index
    %9 = vector.load %arg5[%c0_7, %c0_8] : memref<1x128xf32, #tpu.memory_space<vmem>>, vector<1x128xf32>
    %10 = vector.broadcast %9 : vector<1x128xf32> to vector<8x128xf32>
    %11 = arith.addf %8, %10 : vector<8x128xf32>
    %cst_9 = arith.constant 0.000000e+00 : f32
    %12 = vector.broadcast %cst_9 : f32 to vector<8x128xf32>
    %13 = arith.maximumf %11, %12 : vector<8x128xf32>
    %c0_10 = arith.constant 0 : index
    %c0_11 = arith.constant 0 : index
    %14 = vector.load %arg6[%c0_10, %c0_11] : memref<128x128xf32, #tpu.memory_space<vmem>>, vector<128x128xf32>
    %cst_12 = arith.constant dense<0.000000e+00> : vector<8x128xf32>
    %15 = tpu.matmul %13, %14, %cst_12 {dimension_numbers = #tpu.dot_dimension_numbers<[1], [0], [0], [1], [0, 0, 1, 1], [], []>} : vector<8x128xf32>, vector<128x128xf32>, vector<8x128xf32> -> vector<8x128xf32>
    %c0_13 = arith.constant 0 : index
    %c0_14 = arith.constant 0 : index
    %16 = vector.load %arg7[%c0_13, %c0_14] : memref<1x128xf32, #tpu.memory_space<vmem>>, vector<1x128xf32>
    %17 = vector.broadcast %16 : vector<1x128xf32> to vector<8x128xf32>
    %18 = arith.addf %15, %17 : vector<8x128xf32>
    %cst_15 = arith.constant 0.000000e+00 : f32
    %19 = vector.broadcast %cst_15 : f32 to vector<8x128xf32>
    %20 = arith.maximumf %18, %19 : vector<8x128xf32>
    %c0_16 = arith.constant 0 : index
    %c0_17 = arith.constant 0 : index
    %21 = vector.load %arg8[%c0_16, %c0_17] : memref<128x128xf32, #tpu.memory_space<vmem>>, vector<128x128xf32>
    %cst_18 = arith.constant dense<0.000000e+00> : vector<8x128xf32>
    %22 = tpu.matmul %20, %21, %cst_18 {dimension_numbers = #tpu.dot_dimension_numbers<[1], [0], [0], [1], [0, 0, 1, 1], [], []>} : vector<8x128xf32>, vector<128x128xf32>, vector<8x128xf32> -> vector<8x128xf32>
    %c0_19 = arith.constant 0 : index
    %c0_20 = arith.constant 0 : index
    %23 = vector.load %arg9[%c0_19, %c0_20] : memref<1x128xf32, #tpu.memory_space<vmem>>, vector<1x128xf32>
    %24 = vector.broadcast %23 : vector<1x128xf32> to vector<8x128xf32>
    %25 = arith.addf %22, %24 : vector<8x128xf32>
    %c0_21 = arith.constant 0 : index
    %c0_22 = arith.constant 0 : index
    %26 = vector.load %arg10[%c0_21, %c0_22] : memref<8x128xf32, #tpu.memory_space<vmem>>, vector<8x128xf32>
    tpu.vector_store %arg10[%c0_21, %c0_22], %25 {strides = array<i32>} : memref<8x128xf32, #tpu.memory_space<vmem>>, vector<8x128xf32>,
    return
  }
  func.func @transform_0(%arg0: i32) -> (i32, i32) {
    %c0_i32 = arith.constant 0 : i32
    %c0_i32_0 = arith.constant 0 : i32
    return %arg0, %c0_i32 : i32, i32
  }
  func.func @transform_1(%arg0: i32) -> (i32, i32) {
    %c0_i32 = arith.constant 0 : i32
    %c0_i32_0 = arith.constant 0 : i32
    return %arg0, %c0_i32 : i32, i32
  }
  func.func @transform_2(%arg0: i32) -> (i32, i32) {
    %c0_i32 = arith.constant 0 : i32
    %c0_i32_0 = arith.constant 0 : i32
    %c0_i32_1 = arith.constant 0 : i32
    return %c0_i32, %c0_i32_0 : i32, i32
  }
  func.func @transform_3(%arg0: i32) -> (i32, i32) {
    %c0_i32 = arith.constant 0 : i32
    %c0_i32_0 = arith.constant 0 : i32
    %c0_i32_1 = arith.constant 0 : i32
    return %c0_i32, %c0_i32_0 : i32, i32
  }
  func.func @transform_4(%arg0: i32) -> (i32, i32) {
    %c0_i32 = arith.constant 0 : i32
    %c0_i32_0 = arith.constant 0 : i32
    %c0_i32_1 = arith.constant 0 : i32
    return %c0_i32, %c0_i32_0 : i32, i32
  }
  func.func @transform_5(%arg0: i32) -> (i32, i32) {
    %c0_i32 = arith.constant 0 : i32
    %c0_i32_0 = arith.constant 0 : i32
    %c0_i32_1 = arith.constant 0 : i32
    return %c0_i32, %c0_i32_0 : i32, i32
  }
  func.func @transform_6(%arg0: i32) -> (i32, i32) {
    %c0_i32 = arith.constant 0 : i32
    %c0_i32_0 = arith.constant 0 : i32
    %c0_i32_1 = arith.constant 0 : i32
    return %c0_i32, %c0_i32_0 : i32, i32
  }
  func.func @transform_7(%arg0: i32) -> (i32, i32) {
    %c0_i32 = arith.constant 0 : i32
    %c0_i32_0 = arith.constant 0 : i32
    %c0_i32_1 = arith.constant 0 : i32
    return %c0_i32, %c0_i32_0 : i32, i32
  }
  func.func @transform_8(%arg0: i32) -> (i32, i32) {
    %c0_i32 = arith.constant 0 : i32
    %c0_i32_0 = arith.constant 0 : i32
    %c0_i32_1 = arith.constant 0 : i32
    return %c0_i32, %c0_i32_0 : i32, i32
  }
  func.func @transform_9(%arg0: i32) -> (i32, i32) {
    %c0_i32 = arith.constant 0 : i32
    %c0_i32_0 = arith.constant 0 : i32
    return %arg0, %c0_i32 : i32, i32
  }
}

</mosaic_0001>

<llo_original>
// kernel: _feed_nabla_mu_padded.1
$region0: #{_feed_nabla_mu_padded.1}
  #allocation0 [shape = 'u32[]', space=smem, size = 0x4, offset = 0x4, fixed_abs, tag = 'smem constant byte address 0x4 - core index']
  #allocation1 [shape = 'u32[72,128]{1,0:T(1,128)}', space=vmem, size = 0x9000, scoped, tag = 'internal scratch']
  %s0 = inlined_call_operand.vmem [shape: f32[8,8], index: 0, kind: input, shape index: {}]
  %s1 = inlined_call_operand.vmem [shape: f32[8,1], index: 1, kind: input, shape index: {}]
  %s2 = inlined_call_operand.hbm [shape: f32[8,128], index: 2, kind: input, shape index: {}]
  %s3 = inlined_call_operand.vmem [shape: f32[1,128], index: 3, kind: input, shape index: {}]
  %s4 = inlined_call_operand.vmem [shape: f32[1,128], index: 4, kind: input, shape index: {}]
  %s5 = inlined_call_operand.hbm [shape: f32[128,128], index: 5, kind: input, shape index: {}]
  %s6 = inlined_call_operand.vmem [shape: f32[1,128], index: 6, kind: input, shape index: {}]
  %s7 = inlined_call_operand.hbm [shape: f32[128,128], index: 7, kind: input, shape index: {}]
  %s8 = inlined_call_operand.vmem [shape: f32[1,128], index: 8, kind: input, shape index: {}]
  %s9 = inlined_call_operand.hbm [shape: f32[8,128], index: 9, kind: output, shape index: {}]
  %s10 = sld [smem:[#allocation0]]
  $region58: #{_feed_nabla_mu_padded.1} parent=0
    _
  %s12 = ssub.s32 1, %s10
  %s13 = scalar_select 0, %s12, %s10
  $region1: #{_feed_nabla_mu_padded.1} parent=0
    #allocation2 [shape = 'u8[4096]{0}', space=vmem, size = 0x1000, scoped, tag = 'input window, operand 2, single buffered']
    #allocation3 [shape = 's32[1]{0}', space=sflag, size = 0x4, scoped, tag = 'scoped memory for _feed_nabla_mu_padded.1']
    #allocation4 [shape = 's32[1]{0}', space=sflag, size = 0x4, scoped, tag = 'scoped memory for _feed_nabla_mu_padded.1']
    #allocation5 [shape = 'u8[65536]{0}', space=vmem, size = 0x10000, scoped, tag = 'input window, operand 5, single buffered']
    #allocation6 [shape = 's32[1]{0}', space=sflag, size = 0x4, scoped, tag = 'scoped memory for _feed_nabla_mu_padded.1']
    #allocation7 [shape = 'u8[65536]{0}', space=vmem, size = 0x10000, scoped, tag = 'input window, operand 7, single buffered']
    #allocation8 [shape = 'u8[4096]{0}', space=vmem, size = 0x1000, scoped, tag = 'output window, operand 0, single buffered']
    %14 = vsyncpa [#allocation3], 0
    %15 = vsyncpa [#allocation6], 0
    %16 = vsyncpa [#allocation4], 0
    // Predicated region
    $region2: #{_feed_nabla_mu_padded.1} parent=1 // pred_check
      _
    $region3: #{_feed_nabla_mu_padded.1} parent=1 // pred_check_branch
      %18 = sbr.rel (0) target = $region5
    $region4: #{_feed_nabla_mu_padded.1} parent=1 // pred_region
      _
    $region5: #{_feed_nabla_mu_padded.1} parent=1 // pred_fallthru
      _
    // Predicated region
    $region6: #{_feed_nabla_mu_padded.1} parent=1 // pred_check
      _
    $region7: #{_feed_nabla_mu_padded.1} parent=1 // pred_check_branch
      %20 = sbr.rel (0) target = $region9
    $region8: #{_feed_nabla_mu_padded.1} parent=1 // pred_region
      _
    $region9: #{_feed_nabla_mu_padded.1} parent=1 // pred_fallthru
      _
    // Predicated region
    $region10: #{_feed_nabla_mu_padded.1} parent=1 // pred_check
      _
    $region11: #{_feed_nabla_mu_padded.1} parent=1 // pred_check_branch
      %22 = sbr.rel (0) target = $region13
    $region12: #{_feed_nabla_mu_padded.1} parent=1 // pred_region
      %24 = vsyncadd [#allocation3], 0
      %s26 = sshll.u32 %s2, 4
      %s27 = int_to_ptr.hbm [resolvable:$true] %s26
      %s28 = sshll.u32 [#allocation2], 4
      %s29 = int_to_ptr.vmem [resolvable:$true] %s28
      %31 = dma.hbm_to_vmem [thread:$0]  %s27, 128, %s29, [#allocation3]
    $region13: #{_feed_nabla_mu_padded.1} parent=1 // pred_fallthru
      _
    // Predicated region
    $region14: #{_feed_nabla_mu_padded.1} parent=1 // pred_check
      _
    $region15: #{_feed_nabla_mu_padded.1} parent=1 // pred_check_branch
      %33 = sbr.rel (0) target = $region17
    $region16: #{_feed_nabla_mu_padded.1} parent=1 // pred_region
      _
    $region17: #{_feed_nabla_mu_padded.1} parent=1 // pred_fallthru
      _
    // Predicated region
    $region18: #{_feed_nabla_mu_padded.1} parent=1 // pred_check
      _
    $region19: #{_feed_nabla_mu_padded.1} parent=1 // pred_check_branch
      %35 = sbr.rel (0) target = $region21
    $region20: #{_feed_nabla_mu_padded.1} parent=1 // pred_region
      _
    $region21: #{_feed_nabla_mu_padded.1} parent=1 // pred_fallthru
      _
    // Predicated region
    $region22: #{_feed_nabla_mu_padded.1} parent=1 // pred_check
      _
    $region23: #{_feed_nabla_mu_padded.1} parent=1 // pred_check_branch
      %37 = sbr.rel (0) target = $region25
    $region24: #{_feed_nabla_mu_padded.1} parent=1 // pred_region
      %39 = vsyncadd [#allocation6], 0
      %s40 = sshll.u32 %s5, 4
      %s41 = int_to_ptr.hbm [resolvable:$true] %s40
      %s42 = sshll.u32 [#allocation5], 4
      %s43 = int_to_ptr.vmem [resolvable:$true] %s42
      %48 = dma.hbm_to_vmem [thread:$0]  %s41, 2048, %s43, [#allocation6], 128, 128, 8
    $region25: #{_feed_nabla_mu_padded.1} parent=1 // pred_fallthru
      _
    // Predicated region
    $region26: #{_feed_nabla_mu_padded.1} parent=1 // pred_check
      _
    $region27: #{_feed_nabla_mu_padded.1} parent=1 // pred_check_branch
      %50 = sbr.rel (0) target = $region29
    $region28: #{_feed_nabla_mu_padded.1} parent=1 // pred_region
      _
    $region29: #{_feed_nabla_mu_padded.1} parent=1 // pred_fallthru
      _
    // Predicated region
    $region30: #{_feed_nabla_mu_padded.1} parent=1 // pred_check
      _
    $region31: #{_feed_nabla_mu_padded.1} parent=1 // pred_check_branch
      %52 = sbr.rel (0) target = $region33
    $region32: #{_feed_nabla_mu_padded.1} parent=1 // pred_region
      %54 = vsyncadd [#allocation6], 0
      %s55 = sshll.u32 %s7, 4
      %s56 = int_to_ptr.hbm [resolvable:$true] %s55
      %s57 = sshll.u32 [#allocation7], 4
      %s58 = int_to_ptr.vmem [resolvable:$true] %s57
      %63 = dma.hbm_to_vmem [thread:$0]  %s56, 2048, %s58, [#allocation6], 128, 128, 8
    $region33: #{_feed_nabla_mu_padded.1} parent=1 // pred_fallthru
      _
    // Predicated region
    $region34: #{_feed_nabla_mu_padded.1} parent=1 // pred_check
      _
    $region35: #{_feed_nabla_mu_padded.1} parent=1 // pred_check_branch
      %65 = sbr.rel (0) target = $region37
    $region36: #{_feed_nabla_mu_padded.1} parent=1 // pred_region
      _
    $region37: #{_feed_nabla_mu_padded.1} parent=1 // pred_fallthru
      _
    // Predicated region
    $region38: #{_feed_nabla_mu_padded.1} parent=1 // pred_check
      _
    $region39: #{_feed_nabla_mu_padded.1} parent=1 // pred_check_branch
      %67 = sbr.rel (0) target = $region41
    $region40: #{_feed_nabla_mu_padded.1} parent=1 // pred_region
      %69 = dma.done [#allocation3], 128
    $region41: #{_feed_nabla_mu_padded.1} parent=1 // pred_fallthru
      _
    // Predicated region
    $region42: #{_feed_nabla_mu_padded.1} parent=1 // pred_check
      _
    $region43: #{_feed_nabla_mu_padded.1} parent=1 // pred_check_branch
      %71 = sbr.rel (0) target = $region45
    $region44: #{_feed_nabla_mu_padded.1} parent=1 // pred_region
      %73 = dma.done [#allocation6], 2048
    $region45: #{_feed_nabla_mu_padded.1} parent=1 // pred_fallthru
      _
    // Predicated region
    $region46: #{_feed_nabla_mu_padded.1} parent=1 // pred_check
      _
    $region47: #{_feed_nabla_mu_padded.1} parent=1 // pred_check_branch
      %75 = sbr.rel (0) target = $region49
    $region48: #{_feed_nabla_mu_padded.1} parent=1 // pred_region
      %77 = dma.done [#allocation6], 2048
    $region49: #{_feed_nabla_mu_padded.1} parent=1 // pred_fallthru
      _
    %v78 = vld [vmem:[%s0] sm:$0xff]
    %v79 = vld [vmem:[%s1] sm:$0xff]
    %v80 = vld [vmem:[#allocation2] sm:$0xff]
    %v81 = vld [vmem:[%s3] sm:$0x1]
    %83 = vset.pattern.permute.xlu0 0
    %84 = vperm.xlu0 %83, %v79
    %v85 = vpop.permute.xlu0 %84
    %v88 = vperm.slane %v81, 0
    %v90 = vmul.f32 %v85, %v88
    %vm91 = vcmask 64512
    %v93 = vsel %vm91, %v78, 0
    %95 = vmatpush.msra.mxu0 0.0
    %96 = vmatpush.msra.mxu0 0.0
    %97 = vmatpush.msra.mxu0 0.0
    %98 = vmatpush.msra.mxu0 0.0
    %99 = vmatpush.msra.mxu0 0.0
    %100 = vmatpush.msra.mxu0 0.0
    %101 = vmatpush.msra.mxu0 0.0
    %102 = vmatpush.msra.mxu0 0.0
    %103 = vmatpush.msra.mxu0 0.0
    %104 = vmatpush.msra.mxu0 0.0
    %105 = vmatpush.msra.mxu0 0.0
    %106 = vmatpush.msra.mxu0 0.0
    %107 = vmatpush.msra.mxu0 0.0
    %108 = vmatpush.msra.mxu0 0.0
    %109 = vmatpush.msra.mxu0 0.0
    %110 = vmatpush.msra.mxu0 %v80
    %111 = vmatmul.f32.gmra.mxu0 %v93
    %v112 = vpop.f32.mrf.mxu0
    %v113 = vadd.f32 %v90, %v112
    %114 = vdwg.mxu0
    %v115 = vld [vmem:[%s4] sm:$0x1]
    %v117 = vperm.slane %v115, 0
    %v119 = vadd.f32 %v113, %v117
    %v120 = vmax.f32 %v119, 0.0
    %v121 = vld [vmem:[#allocation5] sm:$0xff]
    %v122 = vld [vmem:[#allocation5 + $0x8] sm:$0xff]
    %v123 = vld [vmem:[#allocation5 + $0x10] sm:$0xff]
    %v124 = vld [vmem:[#allocation5 + $0x18] sm:$0xff]
    %v125 = vld [vmem:[#allocation5 + $0x20] sm:$0xff]
    %v126 = vld [vmem:[#allocation5 + $0x28] sm:$0xff]
    %v127 = vld [vmem:[#allocation5 + $0x30] sm:$0xff]
    %v128 = vld [vmem:[#allocation5 + $0x38] sm:$0xff]
    %v129 = vld [vmem:[#allocation5 + $0x40] sm:$0xff]
    %v130 = vld [vmem:[#allocation5 + $0x48] sm:$0xff]
    %v131 = vld [vmem:[#allocation5 + $0x50] sm:$0xff]
    %v132 = vld [vmem:[#allocation5 + $0x58] sm:$0xff]
    %v133 = vld [vmem:[#allocation5 + $0x60] sm:$0xff]
    %v134 = vld [vmem:[#allocation5 + $0x68] sm:$0xff]
    %v135 = vld [vmem:[#allocation5 + $0x70] sm:$0xff]
    %v136 = vld [vmem:[#allocation5 + $0x78] sm:$0xff]
    %v137 = vld [vmem:[%s6] sm:$0x1]
    %v139 = vperm.slane %v137, 0
    %141 = vmatpush.msra.mxu0 %v136
    %142 = vmatpush.msra.mxu0 %v135
    %143 = vmatpush.msra.mxu0 %v134
    %144 = vmatpush.msra.mxu0 %v133
    %145 = vmatpush.msra.mxu0 %v132
    %146 = vmatpush.msra.mxu0 %v131
    %147 = vmatpush.msra.mxu0 %v130
    %148 = vmatpush.msra.mxu0 %v129
    %149 = vmatpush.msra.mxu0 %v128
    %150 = vmatpush.msra.mxu0 %v127
    %151 = vmatpush.msra.mxu0 %v126
    %152 = vmatpush.msra.mxu0 %v125
    %153 = vmatpush.msra.mxu0 %v124
    %154 = vmatpush.msra.mxu0 %v123
    %155 = vmatpush.msra.mxu0 %v122
    %156 = vmatpush.msra.mxu0 %v121
    %157 = vmatmul.f32.gmra.mxu0 %v120
    %v158 = vpop.f32.mrf.mxu0
    %v159 = vadd.f32 %v139, %v158
    %160 = vdwg.mxu0
    %v161 = vmax.f32 %v159, 0.0
    %v162 = vld [vmem:[#allocation7] sm:$0xff]
    %v163 = vld [vmem:[#allocation7 + $0x8] sm:$0xff]
    %v164 = vld [vmem:[#allocation7 + $0x10] sm:$0xff]
    %v165 = vld [vmem:[#allocation7 + $0x18] sm:$0xff]
    %v166 = vld [vmem:[#allocation7 + $0x20] sm:$0xff]
    %v167 = vld [vmem:[#allocation7 + $0x28] sm:$0xff]
    %v168 = vld [vmem:[#allocation7 + $0x30] sm:$0xff]
    %v169 = vld [vmem:[#allocation7 + $0x38] sm:$0xff]
    %v170 = vld [vmem:[#allocation7 + $0x40] sm:$0xff]
    %v171 = vld [vmem:[#allocation7 + $0x48] sm:$0xff]
    %v172 = vld [vmem:[#allocation7 + $0x50] sm:$0xff]
    %v173 = vld [vmem:[#allocation7 + $0x58] sm:$0xff]
    %v174 = vld [vmem:[#allocation7 + $0x60] sm:$0xff]
    %v175 = vld [vmem:[#allocation7 + $0x68] sm:$0xff]
    %v176 = vld [vmem:[#allocation7 + $0x70] sm:$0xff]
    %v177 = vld [vmem:[#allocation7 + $0x78] sm:$0xff]
    %v178 = vld [vmem:[%s8] sm:$0x1]
    %v180 = vperm.slane %v178, 0
    %182 = vmatpush.msra.mxu0 %v177
    %183 = vmatpush.msra.mxu0 %v176
    %184 = vmatpush.msra.mxu0 %v175
    %185 = vmatpush.msra.mxu0 %v174
    %186 = vmatpush.msra.mxu0 %v173
    %187 = vmatpush.msra.mxu0 %v172
    %188 = vmatpush.msra.mxu0 %v171
    %189 = vmatpush.msra.mxu0 %v170
    %190 = vmatpush.msra.mxu0 %v169
    %191 = vmatpush.msra.mxu0 %v168
    %192 = vmatpush.msra.mxu0 %v167
    %193 = vmatpush.msra.mxu0 %v166
    %194 = vmatpush.msra.mxu0 %v165
    %195 = vmatpush.msra.mxu0 %v164
    %196 = vmatpush.msra.mxu0 %v163
    %197 = vmatpush.msra.mxu0 %v162
    %198 = vmatmul.f32.gmra.mxu0 %v161
    %v199 = vpop.f32.mrf.mxu0
    %v200 = vadd.f32 %v180, %v199
    %201 = vdwg.mxu0
    %202 = vst [vmem:[#allocation8] sm:$0xff] %v200
    // Predicated region
    $region50: #{_feed_nabla_mu_padded.1} parent=1 // pred_check
      _
    $region51: #{_feed_nabla_mu_padded.1} parent=1 // pred_check_branch
      %204 = sbr.rel (0) target = $region53
    $region52: #{_feed_nabla_mu_padded.1} parent=1 // pred_region
      %206 = vsyncadd [#allocation4], 0
      %s208 = sshll.u32 [#allocation8], 4
      %s209 = int_to_ptr.vmem [resolvable:$true] %s208
      %s210 = sshll.u32 %s9, 4
      %s211 = int_to_ptr.hbm [resolvable:$true] %s210
      %213 = dma.vmem_to_hbm [thread:$0]  %s209, 128, %s211, [#allocation4]
    $region53: #{_feed_nabla_mu_padded.1} parent=1 // pred_fallthru
      _
    // Predicated region
    $region54: #{_feed_nabla_mu_padded.1} parent=1 // pred_check
      _
    $region55: #{_feed_nabla_mu_padded.1} parent=1 // pred_check_branch
      %215 = sbr.rel (0) target = $region57
    $region56: #{_feed_nabla_mu_padded.1} parent=1 // pred_region
      %217 = dma.done [#allocation4], 128
    $region57: #{_feed_nabla_mu_padded.1} parent=1 // pred_fallthru
      _
    %218 = vsyncpa [#allocation3], 1
    %219 = vsyncpa [#allocation6], 1
    %220 = vsyncpa [#allocation4], 1

</llo_original>
